<compile_context>
chip_gen: v5e
topology: v5e:2x2
jax: 0.10.0
libtpu: 0.0.40
codegen_flags: <defaults>
</compile_context>

<pallas_src>
import functools

import jax
import jax.numpy as jnp
from jax.experimental import pallas as pl
from jax.experimental.pallas import tpu as pltpu


def _focal_loss_kernel(x_ref, t_ref, out_ref, acc_ref, *, gamma, alpha, hw, tile_hw):
    j = pl.program_id(1)                      # reduction axis over H*W tiles

    @pl.when(j == 0)
    def _init():
        acc_ref[...] = jnp.zeros_like(acc_ref)

    x = x_ref[0].astype(jnp.float32)          # (C, TILE_HW): classes on sublanes
    t = t_ref[0]                              # (1, TILE_HW) int32 targets
    c = x.shape[0]

    # numerically-stable log_softmax over the class (sublane) axis
    m = jnp.max(x, axis=0, keepdims=True)                       # (1, TILE_HW)
    shifted = x - m
    lse = jnp.log(jnp.sum(jnp.exp(shifted), axis=0, keepdims=True))

    # gather shifted-logit at target class via one-hot over the small C axis
    cls_ids = jax.lax.broadcasted_iota(jnp.int32, x.shape, 0)   # (C, TILE_HW)
    onehot = (cls_ids == t).astype(jnp.float32)
    logpt = jnp.sum(shifted * onehot, axis=0, keepdims=True) - lse   # (1, TILE_HW)
    pt = jnp.exp(logpt)

    # alpha gather: compile-time constants -> lane-wise select chain (no DMA,
    # no extra cross-sublane reduce); skipped entirely when alpha is None.
    if alpha is not None:
        at = jnp.full(t.shape, jnp.float32(alpha[0]), jnp.float32)
        for k in range(1, c):
            at = jnp.where(t == k, jnp.float32(alpha[k]), at)
        logpt = logpt * at

    w = 1.0 - pt
    if gamma == 2:                      # exact, two VPU muls, no EUP pow chain
        focal = w * w
    elif float(gamma) == int(gamma):
        focal = jax.lax.integer_pow(w, int(gamma))
    else:
        focal = w ** gamma
    loss = -focal * logpt                                       # (1, TILE_HW)

    # mask the ragged tail of the last H*W tile (grid uses cdiv, no padding)
    hw_ids = j * tile_hw + jax.lax.broadcasted_iota(jnp.int32, loss.shape, 1)
    loss = jnp.where(hw_ids < hw, loss, 0.0)

    # lane-wide accumulation; defer the scalar reduce to the finalize step
    acc_ref[...] += loss

    @pl.when(j == pl.num_programs(1) - 1)
    def _finalize():
        out_ref[...] = jnp.reshape(jnp.sum(acc_ref[...]), (1, 1, 1))


def focal_loss(logits, target, *, gamma=2, alpha=None, size_average=True,
               block_bytes=2 * 1024 * 1024):
    """Focal loss matching the PyTorch FocalLoss.forward semantics."""
    if logits.ndim > 2:
        n, c = int(logits.shape[0]), int(logits.shape[1])
        hw = 1
        for d in logits.shape[2:]:
            hw *= int(d)
        x = logits.reshape(n, c, hw)                 # free view of NCHW (no transpose)
        t = target.reshape(n, 1, hw).astype(jnp.int32)
    else:
        m, c = int(logits.shape[0]), int(logits.shape[1])
        n, hw = 1, m
        x = logits.T.reshape(1, c, hw)               # small 2-D fallback path
        t = target.reshape(1, 1, hw).astype(jnp.int32)

    # alpha setup (mirrors FocalLoss.__init__); baked in as compile-time consts
    if alpha is None:
        alpha_t = None
    elif isinstance(alpha, (float, int)):
        assert c == 2, "scalar alpha only valid for 2-class problems"
        alpha_t = (float(alpha), 1.0 - float(alpha))
    else:
        alpha_t = tuple(float(a) for a in alpha)
        assert len(alpha_t) == c

    # tile the H*W (lane) axis; ~block_bytes per logits block, multiple of 128,
    # double-buffered well inside the v7x scoped-VMEM default.
    itemsize = jnp.dtype(x.dtype).itemsize
    tile_hw = max(128, (block_bytes // (c * itemsize)) // 128 * 128)
    if tile_hw >= hw:
        tile_hw = hw            # full-dim block (always a legal block shape)
        num_tiles = 1
    else:
        num_tiles = pl.cdiv(hw, tile_hw)   # ragged tail masked in-kernel

    kernel = functools.partial(
        _focal_loss_kernel, gamma=gamma, alpha=alpha_t, hw=hw, tile_hw=tile_hw)

    partials = pl.pallas_call(
        kernel,
        out_shape=jax.ShapeDtypeStruct((n, 1, 1), jnp.float32),
        grid_spec=pltpu.PrefetchScalarGridSpec(
            num_scalar_prefetch=0,
            grid=(n, num_tiles),
            in_specs=[
                pl.BlockSpec((1, c, tile_hw), lambda b, j: (b, 0, j)),  # logits
                pl.BlockSpec((1, 1, tile_hw), lambda b, j: (b, 0, j)),  # targets
            ],
            out_specs=pl.BlockSpec((1, 1, 1), lambda b, j: (b, 0, 0)),  # per-batch partial
            scratch_shapes=[pltpu.VMEM((1, tile_hw), jnp.float32)],
        ),
        compiler_params=pltpu.CompilerParams(
            dimension_semantics=("parallel", "arbitrary"),
        ),
    )(x, t)

    total = jnp.sum(partials)
    if size_average:
        total = total / jnp.float32(n * hw)
    return total


def _focal_loss_ref(logits_nchw, target_nhw, gamma, alpha, size_average):
    n, c = logits_nchw.shape[0], logits_nchw.shape[1]
    x = logits_nchw.reshape(n, c, -1).transpose(0, 2, 1).reshape(-1, c)
    t = target_nhw.reshape(-1).astype(jnp.int32)
    logp = jax.nn.log_softmax(x, axis=1)
    logpt = jnp.take_along_axis(logp, t[:, None], axis=1)[:, 0]
    pt = jnp.exp(logpt)
    if alpha is not None:
        a = jnp.asarray(alpha, dtype=jnp.float32)
        logpt = logpt * a[t]
    loss = -((1.0 - pt) ** gamma) * logpt
    return loss.mean() if size_average else loss.sum()


if __name__ == "__main__":
    key = jax.random.PRNGKey(0)
    k1, k2, k3, k4 = jax.random.split(key, 4)

    # Case 1: per-class alpha list, size_average=True
    N, C, H, W = 2, 4, 16, 16
    logits = jax.random.normal(k1, (N, C, H, W), dtype=jnp.float32)
    target = jax.random.randint(k2, (N, H, W), 0, C, dtype=jnp.int32)
    alpha = [0.1, 0.2, 0.3, 0.4]

    out = focal_loss(logits, target, gamma=2, alpha=alpha, size_average=True)
    out = jax.block_until_ready(out)
    ref = _focal_loss_ref(logits, target, 2, alpha, True)
    assert jnp.allclose(out, ref, rtol=1e-5, atol=1e-6), (out, ref)

    # Case 2: ragged H*W (200, not a multiple of 128), no alpha, sum reduction;
    # small block budget forces tile_hw=128 -> 2 tiles with a masked tail.
    N2, C2, H2, W2 = 2, 3, 10, 20
    logits2 = jax.random.normal(k3, (N2, C2, H2, W2), dtype=jnp.float32)
    target2 = jax.random.randint(k4, (N2, H2, W2), 0, C2, dtype=jnp.int32)

    out2 = focal_loss(logits2, target2, gamma=2, alpha=None, size_average=False,
                      block_bytes=128 * C2 * 4)
    out2 = jax.block_until_ready(out2)
    ref2 = _focal_loss_ref(logits2, target2, 2, None, False)
    assert jnp.allclose(out2, ref2, rtol=1e-5, atol=1e-5), (out2, ref2)

    print("KERNEL_OK")
</pallas_src>

<mosaic_0001>
module attributes {stable_mosaic.version = 11 : i64} {
  func.func @_focal_loss_kernel(%arg0: i32, %arg1: i32, %arg2: memref<1x4x256xf32, #tpu.memory_space<vmem>>, %arg3: memref<1x1x256xi32, #tpu.memory_space<vmem>>, %arg4: memref<1x1x1xf32, #tpu.memory_space<vmem>>, %arg5: memref<1x256xf32, #tpu.memory_space<vmem>>) attributes {dimension_semantics = [#tpu.dimension_semantics<parallel>, #tpu.dimension_semantics<arbitrary>], iteration_bounds = array<i64: 2, 1>, scalar_prefetch = 0 : i64, scratch_operands = 1 : i64, tpu.core_type = #tpu.core_type<tc>, window_params = [{transform_indices = @transform_0, window_bounds = array<i64: 1, 4, 256>}, {transform_indices = @transform_1, window_bounds = array<i64: 1, 1, 256>}, {transform_indices = @transform_2, window_bounds = array<i64: 1, 1, 1>}]} {
    %c0_i32 = arith.constant 0 : i32
    %0 = arith.cmpi eq, %arg1, %c0_i32 : i32
    %1 = arith.extui %0 : i1 to i32
    %c0_i32_0 = arith.constant 0 : i32
    %2 = arith.cmpi ne, %1, %c0_i32_0 : i32
    scf.if %2 {
      %cst_22 = arith.constant 0.000000e+00 : f32
      %59 = vector.broadcast %cst_22 : f32 to vector<1x256xf32>
      %c0_23 = arith.constant 0 : index
      %c0_24 = arith.constant 0 : index
      %60 = vector.load %arg5[%c0_23, %c0_24] : memref<1x256xf32, #tpu.memory_space<vmem>>, vector<1x256xf32>
      tpu.vector_store %arg5[%c0_23, %c0_24], %59 {strides = array<i32>} : memref<1x256xf32, #tpu.memory_space<vmem>>, vector<1x256xf32>,
    } else {
    }
    %c0 = arith.constant 0 : index
    %c0_1 = arith.constant 0 : index
    %c0_2 = arith.constant 0 : index
    %3 = vector.load %arg2[%c0, %c0_1, %c0_2] : memref<1x4x256xf32, #tpu.memory_space<vmem>>, vector<1x4x256xf32>
    %4 = vector.shape_cast %3 : vector<1x4x256xf32> to vector<4x256xf32>
    %c0_3 = arith.constant 0 : index
    %c0_4 = arith.constant 0 : index
    %c0_5 = arith.constant 0 : index
    %5 = vector.load %arg3[%c0_3, %c0_4, %c0_5] : memref<1x1x256xi32, #tpu.memory_space<vmem>>, vector<1x1x256xi32>
    %6 = vector.shape_cast %5 : vector<1x1x256xi32> to vector<1x256xi32>
    %cst = arith.constant dense<0xFF800000> : vector<256xf32>
    %7 = vector.multi_reduction <maximumf>, %4, %cst [0] : vector<4x256xf32> to vector<256xf32>
    %8 = vector.shape_cast %7 : vector<256xf32> to vector<1x256xf32>
    %9 = vector.broadcast %8 : vector<1x256xf32> to vector<4x256xf32>
    %10 = arith.subf %4, %9 : vector<4x256xf32>
    %11 = math.exp %10 : vector<4x256xf32>
    %cst_6 = arith.constant dense<0.000000e+00> : vector<256xf32>
    %12 = vector.multi_reduction <add>, %11, %cst_6 [0] : vector<4x256xf32> to vector<256xf32>
    %13 = vector.shape_cast %12 : vector<256xf32> to vector<1x256xf32>
    %14 = math.log %13 : vector<1x256xf32>
    %15 = tpu.iota {dimensions = array<i32: 0>} : vector<4x256xi32>
    %16 = vector.broadcast %6 : vector<1x256xi32> to vector<4x256xi32>
    %17 = arith.cmpi eq, %15, %16 : vector<4x256xi32>
    %18 = arith.extui %17 : vector<4x256xi1> to vector<4x256xi32>
    %19 = arith.sitofp %18 : vector<4x256xi32> to vector<4x256xf32>
    %20 = arith.mulf %10, %19 : vector<4x256xf32>
    %cst_7 = arith.constant dense<0.000000e+00> : vector<256xf32>
    %21 = vector.multi_reduction <add>, %20, %cst_7 [0] : vector<4x256xf32> to vector<256xf32>
    %22 = vector.shape_cast %21 : vector<256xf32> to vector<1x256xf32>
    %23 = arith.subf %22, %14 : vector<1x256xf32>
    %24 = math.exp %23 : vector<1x256xf32>
    %cst_8 = arith.constant 1.000000e-01 : f32
    %25 = vector.broadcast %cst_8 : f32 to vector<1x256xf32>
    %c1_i32 = arith.constant 1 : i32
    %26 = vector.broadcast %c1_i32 : i32 to vector<1x256xi32>
    %27 = arith.cmpi eq, %6, %26 : vector<1x256xi32>
    %cst_9 = arith.constant 2.000000e-01 : f32
    %28 = vector.broadcast %cst_9 : f32 to vector<1x256xf32>
    %29 = arith.select %27, %28, %25 : vector<1x256xi1>, vector<1x256xf32>
    %c2_i32 = arith.constant 2 : i32
    %30 = vector.broadcast %c2_i32 : i32 to vector<1x256xi32>
    %31 = arith.cmpi eq, %6, %30 : vector<1x256xi32>
    %cst_10 = arith.constant 3.000000e-01 : f32
    %32 = vector.broadcast %cst_10 : f32 to vector<1x256xf32>
    %33 = arith.select %31, %32, %29 : vector<1x256xi1>, vector<1x256xf32>
    %c3_i32 = arith.constant 3 : i32
    %34 = vector.broadcast %c3_i32 : i32 to vector<1x256xi32>
    %35 = arith.cmpi eq, %6, %34 : vector<1x256xi32>
    %cst_11 = arith.constant 4.000000e-01 : f32
    %36 = vector.broadcast %cst_11 : f32 to vector<1x256xf32>
    %37 = arith.select %35, %36, %33 : vector<1x256xi1>, vector<1x256xf32>
    %38 = arith.mulf %23, %37 : vector<1x256xf32>
    %cst_12 = arith.constant 1.000000e+00 : f32
    %39 = vector.broadcast %cst_12 : f32 to vector<1x256xf32>
    %40 = arith.subf %39, %24 : vector<1x256xf32>
    %41 = arith.mulf %40, %40 : vector<1x256xf32>
    %cst_13 = arith.constant 0.000000e+00 : f32
    %42 = vector.broadcast %cst_13 : f32 to vector<1x256xf32>
    %43 = arith.subf %42, %41 : vector<1x256xf32>
    %44 = arith.mulf %43, %38 : vector<1x256xf32>
    %c256_i32 = arith.constant 256 : i32
    %45 = arith.muli %arg1, %c256_i32 : i32
    %46 = tpu.iota {dimensions = array<i32: 1>} : vector<1x256xi32>
    %47 = vector.broadcast %45 : i32 to vector<1x256xi32>
    %48 = arith.addi %47, %46 : vector<1x256xi32>
    %c256_i32_14 = arith.constant 256 : i32
    %49 = vector.broadcast %c256_i32_14 : i32 to vector<1x256xi32>
    %50 = arith.cmpi slt, %48, %49 : vector<1x256xi32>
    %cst_15 = arith.constant 0.000000e+00 : f32
    %51 = vector.broadcast %cst_15 : f32 to vector<1x256xf32>
    %52 = arith.select %50, %44, %51 : vector<1x256xi1>, vector<1x256xf32>
    %c0_16 = arith.constant 0 : index
    %c0_17 = arith.constant 0 : index
    %53 = vector.load %arg5[%c0_16, %c0_17] : memref<1x256xf32, #tpu.memory_space<vmem>>, vector<1x256xf32>
    %54 = arith.addf %53, %52 : vector<1x256xf32>
    %c0_18 = arith.constant 0 : index
    %c0_19 = arith.constant 0 : index
    %55 = vector.load %arg5[%c0_18, %c0_19] : memref<1x256xf32, #tpu.memory_space<vmem>>, vector<1x256xf32>
    tpu.vector_store %arg5[%c0_18, %c0_19], %54 {strides = array<i32>} : memref<1x256xf32, #tpu.memory_space<vmem>>, vector<1x256xf32>,
    %c0_i32_20 = arith.constant 0 : i32
    %56 = arith.cmpi eq, %arg1, %c0_i32_20 : i32
    %57 = arith.extui %56 : i1 to i32
    %c0_i32_21 = arith.constant 0 : i32
    %58 = arith.cmpi ne, %57, %c0_i32_21 : i32
    scf.if %58 {
      %c0_22 = arith.constant 0 : index
      %c0_23 = arith.constant 0 : index
      %59 = vector.load %arg5[%c0_22, %c0_23] : memref<1x256xf32, #tpu.memory_space<vmem>>, vector<1x256xf32>
      %60 = vector.shape_cast %59 : vector<1x256xf32> to vector<1x1x256xf32>
      %cst_24 = arith.constant dense<0.000000e+00> : vector<1xf32>
      %61 = vector.multi_reduction <add>, %60, %cst_24 [1, 2] : vector<1x1x256xf32> to vector<1xf32>
      %62 = vector.shape_cast %61 : vector<1xf32> to vector<1x1x1xf32>
      %63 = vector.extract %62[0, 0, 0] : f32 from vector<1x1x1xf32>
      %64 = vector.broadcast %63 : f32 to vector<1x1x1xf32>
      %c0_25 = arith.constant 0 : index
      %c0_26 = arith.constant 0 : index
      %c0_27 = arith.constant 0 : index
      %65 = vector.load %arg4[%c0_25, %c0_26, %c0_27] : memref<1x1x1xf32, #tpu.memory_space<vmem>>, vector<1x1x1xf32>
      tpu.vector_store %arg4[%c0_25, %c0_26, %c0_27], %64 {strides = array<i32>} : memref<1x1x1xf32, #tpu.memory_space<vmem>>, vector<1x1x1xf32>,
    } else {
    }
    return
  }
  func.func @transform_0(%arg0: i32, %arg1: i32) -> (i32, i32, i32) {
    %c0_i32 = arith.constant 0 : i32
    %c0_i32_0 = arith.constant 0 : i32
    return %arg0, %c0_i32, %arg1 : i32, i32, i32
  }
  func.func @transform_1(%arg0: i32, %arg1: i32) -> (i32, i32, i32) {
    %c0_i32 = arith.constant 0 : i32
    %c0_i32_0 = arith.constant 0 : i32
    return %arg0, %c0_i32, %arg1 : i32, i32, i32
  }
  func.func @transform_2(%arg0: i32, %arg1: i32) -> (i32, i32, i32) {
    %c0_i32 = arith.constant 0 : i32
    %c0_i32_0 = arith.constant 0 : i32
    %c0_i32_1 = arith.constant 0 : i32
    return %arg0, %c0_i32, %c0_i32_0 : i32, i32, i32
  }
}

</mosaic_0001>

<llo_original>
// kernel: tpu_custom_call.1
$region0: #{tpu_custom_call.1}
  #allocation0 [shape = 'u32[]', space=smem, size = 0x4, offset = 0x4, fixed_abs, tag = 'smem constant byte address 0x4 - core index']
  #allocation1 [shape = 'u32[72,128]{1,0:T(1,128)}', space=vmem, size = 0x9000, scoped, tag = 'internal scratch']
  #allocation2 [shape = 'f32[1,256]{1,0:T(1,128)}', space=vmem, size = 0x400, scoped, tag = 'scratch operand']
  %s0 = inlined_call_operand.hbm [shape: f32[2,4,256], index: 0, kind: input, shape index: {}]
  %s1 = inlined_call_operand.hbm [shape: s32[2,1,256], index: 1, kind: input, shape index: {}]
  %s2 = inlined_call_operand.vmem [shape: f32[2,1,1], index: 2, kind: output, shape index: {}]
  %s3 = sld [smem:[#allocation0]]
  $region57: #{tpu_custom_call.1} parent=0
    _
  %s5 = ssub.s32 1, %s3
  %s6 = scalar_select 0, %s5, %s3
  $region1: #{tpu_custom_call.1} parent=0
    #allocation3 [shape = 'u8[8192]{0}', space=vmem, size = 0x2000, scoped, tag = 'input window, operand 0']
    #allocation4 [shape = 's32[2]{0}', space=sflag, size = 0x8, scoped, tag = 'scoped memory for tpu_custom_call.1']
    #allocation5 [shape = 'u8[2048]{0}', space=vmem, size = 0x800, scoped, tag = 'input window, operand 1']
    #allocation6 [shape = 's32[2]{0}', space=sflag, size = 0x8, scoped, tag = 'scoped memory for tpu_custom_call.1']
    %7 = vsyncpa [#allocation4], 0
    %s8 = scalar_lea.sflag [#allocation4], 1
    %9 = vsyncpa %s8, 0
    %10 = vsyncpa [#allocation6], 0
    %s11 = scalar_lea.sflag [#allocation6], 1
    %12 = vsyncpa %s11, 0
    loop: start=0, step=1, limit=4
    $region2: #{tpu_custom_call.1} parent=1 // loop_pre_header
      _
    $region3: #{tpu_custom_call.1} parent=1 // loop_header
      %s14 = sphi 0, %s18
      %p15 = scmp.ge.s32.totalorder %s14, 4
      %s21 = sphi 0, %s33
      %s22 = sphi 0, %s29
      %s23 = sphi 0, %s21
      %s24 = sphi 0, %s22
      %s25 = sphi 0, %s23
      %s26 = sphi 0, %s24
      %s38 = sphi 0, %s40
      %s41 = sphi 0, %s38
      %s42 = sphi 0, %s41
      %s58 = sphi 0, %s42
      %s66 = sphi 0, %s68
      %s69 = sphi 0, %s66
      %s70 = sphi 0, %s69
      %s86 = sphi 0, %s70
      %s92 = sphi 0, %s94
      %s95 = sphi 0, %s92
      %s96 = sphi 0, %s95
      %s112 = sphi 0, %s96
    $region4: #{tpu_custom_call.1} parent=1 // loop_header_branch
      %17 = sbr.rel (%p15) target = $region8
    $region5: #{tpu_custom_call.1} parent=1 // loop_body
      %s19 = ssub.s32 %s14, 1
      %s20 = ssub.s32 %s14, 2
      %s27 = sadd.s32 1, %s22
      %p28 = scmp.ge.s32.totalorder %s27, 1
      %s29 = scalar_select %p28, 0, %s27
      %s30 = sadd.s32 1, %s21
      %s31 = scalar_select %p28, %s30, %s21
      %p32 = scmp.ge.s32.totalorder %s31, 2
      %s33 = scalar_select %p32, 0, %s31
      %s34 = ssub.s32 %s21, %s33
      %s35 = ssub.s32 %s22, %s29
      %s36 = sor.u32 %s34, %s35
      %p37 = scmp.eq.s32.totalorder %s36, 0
      %s39 = sadd.s32 %s38, 1
      %s40 = scalar_select %p37, %s38, %s39
      %p43 = pneg %p37
      %p44 = scmp.eq.s32.totalorder %s14, 1
      %p45 = por %p43, %p44
      %p46 = scmp.ne.s32.totalorder %s38, %s41
      %p47 = scmp.eq.s32.totalorder %s14, 0
      %p48 = por %p46, %p47
      %p49 = scmp.ne.s32.totalorder %s38, %s41
      %p50 = scmp.eq.s32.totalorder %s19, 1
      %p51 = por %p49, %p50
      %p52 = scmp.ne.s32.totalorder %s41, %s42
      %p53 = scmp.eq.s32.totalorder %s19, 0
      %p54 = por %p52, %p53
      %p55 = scmp.ne.s32.totalorder %s41, %s42
      %p56 = scmp.eq.s32.totalorder %s20, 1
      %p57 = por %p55, %p56
      %p59 = scmp.ne.s32.totalorder %s42, %s58
      %p60 = scmp.eq.s32.totalorder %s20, 0
      %p61 = por %p59, %p60
      %s62 = ssub.s32 %s21, %s33
      %s63 = ssub.s32 %s22, %s29
      %s64 = sor.u32 %s62, %s63
      %p65 = scmp.eq.s32.totalorder %s64, 0
      %s67 = sadd.s32 %s66, 1
      %s68 = scalar_select %p65, %s66, %s67
      %p71 = pneg %p65
      %p72 = scmp.eq.s32.totalorder %s14, 1
      %p73 = por %p71, %p72
      %p74 = scmp.ne.s32.totalorder %s66, %s69
      %p75 = scmp.eq.s32.totalorder %s14, 0
      %p76 = por %p74, %p75
      %p77 = scmp.ne.s32.totalorder %s66, %s69
      %p78 = scmp.eq.s32.totalorder %s19, 1
      %p79 = por %p77, %p78
      %p80 = scmp.ne.s32.totalorder %s69, %s70
      %p81 = scmp.eq.s32.totalorder %s19, 0
      %p82 = por %p80, %p81
      %p83 = scmp.ne.s32.totalorder %s69, %s70
      %p84 = scmp.eq.s32.totalorder %s20, 1
      %p85 = por %p83, %p84
      %p87 = scmp.ne.s32.totalorder %s70, %s86
      %p88 = scmp.eq.s32.totalorder %s20, 0
      %p89 = por %p87, %p88
      %s90 = ssub.s32 %s21, %s33
      %p91 = scmp.eq.s32.totalorder %s90, 0
      %s93 = sadd.s32 %s92, 1
      %s94 = scalar_select %p91, %s92, %s93
      %p97 = pneg %p91
      %p98 = scmp.eq.s32.totalorder %s14, 1
      %p99 = por %p97, %p98
      %p100 = scmp.ne.s32.totalorder %s92, %s95
      %p101 = scmp.eq.s32.totalorder %s14, 0
      %p102 = por %p100, %p101
      %p103 = scmp.ne.s32.totalorder %s92, %s95
      %p104 = scmp.eq.s32.totalorder %s19, 1
      %p105 = por %p103, %p104
      %p106 = scmp.ne.s32.totalorder %s95, %s96
      %p107 = scmp.eq.s32.totalorder %s19, 0
      %p108 = por %p106, %p107
      %p109 = scmp.ne.s32.totalorder %s95, %s96
      %p110 = scmp.eq.s32.totalorder %s20, 1
      %p111 = por %p109, %p110
      %p113 = scmp.ne.s32.totalorder %s96, %s112
      %p114 = scmp.eq.s32.totalorder %s20, 0
      %p115 = por %p113, %p114
      %p116 = scmp.le.s32.totalorder 1, %s14
      %p117 = scmp.lt.s32.totalorder %s14, 3
      %p118 = pnand %p116, %p117
      %p119 = pneg %p118
      // Predicated region
      $region9: #{tpu_custom_call.1} parent=5 // pred_check
        _
      $region10: #{tpu_custom_call.1} parent=5 // pred_check_branch
        %121 = sbr.rel (%p118) target = $region12
      $region11: #{tpu_custom_call.1} parent=5 // pred_region
        %s122 = ssub.s32 %s14, 1
      $region12: #{tpu_custom_call.1} parent=5 // pred_fallthru
        _
      %p123 = scmp.lt.s32.totalorder %s14, 2
      // Predicated region
      $region13: #{tpu_custom_call.1} parent=5 // pred_check
        %p124 = pneg %p123
      $region14: #{tpu_custom_call.1} parent=5 // pred_check_branch
        %126 = sbr.rel (%p124) target = $region16
      $region15: #{tpu_custom_call.1} parent=5 // pred_region
        // Predicated region
        $region17: #{tpu_custom_call.1} parent=15 // pred_check
          %p127 = pneg %p48
        $region18: #{tpu_custom_call.1} parent=15 // pred_check_branch
          %129 = sbr.rel (%p127) target = $region20
        $region19: #{tpu_custom_call.1} parent=15 // pred_region
          %s130 = sand.u32 %s38, 1
          %s131 = scalar_lea.sflag [#allocation4], %s130
          %s132 = sand.u32 %s38, 1
          %s133 = smul.addr %s132, 8
          %s134 = scalar_lea.vmem [#allocation3], %s133
          %s135 = smul.u32 2, %s22
          %137 = vsyncadd %s131, 0
          %s138 = smul.addr %s21, 2
          %s139 = sadd.s32 %s135, %s138
          %s140 = smul.addr %s139, 4
          %s141 = scalar_lea.hbm %s0, %s140
          %s143 = sshll.u32 %s141, 4
          %s144 = int_to_ptr.hbm [resolvable:$true] %s143
          %s145 = sshll.u32 %s134, 4
          %s146 = int_to_ptr.vmem [resolvable:$true] %s145
          %148 = dma.hbm_to_vmem [thread:$0]  %s144, 128, %s146, %s131
        $region20: #{tpu_custom_call.1} parent=15 // pred_fallthru
          _
        // Predicated region
        $region21: #{tpu_custom_call.1} parent=15 // pred_check
          %p149 = pneg %p76
        $region22: #{tpu_custom_call.1} parent=15 // pred_check_branch
          %151 = sbr.rel (%p149) target = $region24
        $region23: #{tpu_custom_call.1} parent=15 // pred_region
          %s152 = sand.u32 %s66, 1
          %s153 = scalar_lea.sflag [#allocation6], %s152
          %s154 = sand.u32 %s66, 1
          %s155 = smul.addr %s154, 2
          %s156 = scalar_lea.vmem [#allocation5], %s155
          %s157 = smul.u32 2, %s22
          %159 = vsyncadd %s153, 0
          %s160 = smul.addr %s21, 2
          %s161 = sadd.s32 %s157, %s160
          %s162 = scalar_lea.hbm %s1, %s161
          %s164 = sshll.u32 %s162, 4
          %s165 = int_to_ptr.hbm [resolvable:$true] %s164
          %s166 = sshll.u32 %s156, 4
          %s167 = int_to_ptr.vmem [resolvable:$true] %s166
          %169 = dma.hbm_to_vmem [thread:$0]  %s165, 32, %s167, %s153
        $region24: #{tpu_custom_call.1} parent=15 // pred_fallthru
          _
      $region16: #{tpu_custom_call.1} parent=5 // pred_fallthru
        _
      %p170 = scmp.le.s32.totalorder 1, %s14
      %p171 = scmp.lt.s32.totalorder %s14, 3
      %p172 = pnand %p170, %p171
      %p173 = pneg %p172
      // Predicated region
      $region25: #{tpu_custom_call.1} parent=5 // pred_check
        _
      $region26: #{tpu_custom_call.1} parent=5 // pred_check_branch
        %175 = sbr.rel (%p172) target = $region28
      $region27: #{tpu_custom_call.1} parent=5 // pred_region
        %s176 = ssub.s32 %s14, 1
        %s177 = sand.u32 %s41, 1
        %s178 = scalar_lea.sflag [#allocation4], %s177
        %s179 = sand.u32 %s41, 1
        %s180 = smul.addr %s179, 8
        %s181 = scalar_lea.vmem [#allocation3], %s180
        // Predicated region
        $region29: #{tpu_custom_call.1} parent=27 // pred_check
          %p182 = pneg %p54
        $region30: #{tpu_custom_call.1} parent=27 // pred_check_branch
          %184 = sbr.rel (%p182) target = $region32
        $region31: #{tpu_custom_call.1} parent=27 // pred_region
          %186 = dma.done %s178, 128
        $region32: #{tpu_custom_call.1} parent=27 // pred_fallthru
          _
        %s187 = sand.u32 %s69, 1
        %s188 = scalar_lea.sflag [#allocation6], %s187
        %s189 = sand.u32 %s69, 1
        %s190 = smul.addr %s189, 2
        %s191 = scalar_lea.vmem [#allocation5], %s190
        // Predicated region
        $region33: #{tpu_custom_call.1} parent=27 // pred_check
          %p192 = pneg %p82
        $region34: #{tpu_custom_call.1} parent=27 // pred_check_branch
          %194 = sbr.rel (%p192) target = $region36
        $region35: #{tpu_custom_call.1} parent=27 // pred_region
          %196 = dma.done %s188, 32
        $region36: #{tpu_custom_call.1} parent=27 // pred_fallthru
          _
        %s197 = sand.u32 %s41, 1
        %s198 = scalar_lea.sflag [#allocation4], %s197
        %s199 = sand.u32 %s41, 1
        %s200 = smul.addr %s199, 8
        %s201 = scalar_lea.vmem [#allocation3], %s200
        %p202 = pneg %p54
        %p203 = pneg %p51
        %s204 = sand.u32 %s69, 1
        %s205 = scalar_lea.sflag [#allocation6], %s204
        %s206 = sand.u32 %s69, 1
        %s207 = smul.addr %s206, 2
        %s208 = scalar_lea.vmem [#allocation5], %s207
        %p209 = pneg %p82
        %p210 = pneg %p79
        %p211 = pneg %p108
        %p212 = pneg %p105
        %p213 = scmp.lt.s32.totalorder %s23, 1
        %s214 = scalar_select %p213, %s23, 1
        %s215 = scalar_lea.vmem %s2, %s214
        %s216 = smul.u32 2, %s24
        %s217 = smul.u32 2, %s24
        %p218 = scmp.lt.s32.totalorder %s23, 1
        %s219 = scalar_select %p218, %s23, 1
        %s220 = scalar_lea.vmem %s2, %s219
        %p221 = scmp.eq.s32.totalorder %s24, 0
        // Predicated region
        $region37: #{tpu_custom_call.1} parent=27 // pred_check
          %p222 = pneg %p221
        $region38: #{tpu_custom_call.1} parent=27 // pred_check_branch
          %224 = sbr.rel (%p222) target = $region40
        $region39: #{tpu_custom_call.1} parent=27 // pred_region
          %v225 = vlaneseq
          %vm226 = vcmp.ge.s32.totalorder %v225, 0
          %vm227 = vcmp.lt.s32.totalorder %v225, 256
          %vm228 = vmand %vm226, %vm227
          %229 = vst.msk [vmem:[#allocation2] sm:$0x3] %vm228, 0.0
        $region40: #{tpu_custom_call.1} parent=27 // pred_fallthru
          _
        %v230 = vld [vmem:[%s181] sm:$0xff]
        %v231 = vld [vmem:[%s191] sm:$0x3]
        %233 = vst [vmem:[#allocation1] ss:$2 sm:$0xff] %v230
        %v234 = vld.sshfl [vmem:[#allocation1] sm:$0xff pattern:$0x75316420]
        %v235 = vld.sshfl [vmem:[#allocation1 + $0x8] sm:$0xff pattern:$0x75316420]
        %vm238 = vcmask 1043456
        %v239 = vsel %vm238, %v234, -inf
        %v240 = vrot.slane %v239, 4
        %v241 = vmax.f32 %v239, %v240
        %v242 = vrot.slane %v241, 2
        %v243 = vmax.f32 %v241, %v242
        %v244 = vrot.slane %v243, 1
        %v245 = vmax.f32 %v243, %v244
        %v246 = vsel %vm238, %v235, -inf
        %v247 = vrot.slane %v246, 4
        %v248 = vmax.f32 %v246, %v247
        %v249 = vrot.slane %v248, 2
        %v250 = vmax.f32 %v248, %v249
        %v251 = vrot.slane %v250, 1
        %v252 = vmax.f32 %v250, %v251
        %v255 = vrot.slane %v252, 4
        %v256 = vsel %vm238, %v245, %v255
        %v258 = vsub.f32 %v230, %v256
        %v259 = vmul.f32 %v258, 1.442695
        %v260 = vpow.pop %v259
        %262 = vst [vmem:[#allocation1] ss:$2 sm:$0xff] %v260
        %v263 = vld.sshfl [vmem:[#allocation1] sm:$0xff pattern:$0x75316420]
        %v264 = vld.sshfl [vmem:[#allocation1 + $0x8] sm:$0xff pattern:$0x75316420]
        %v267 = vsel %vm238, %v263, 0.0
        %v268 = vrot.slane %v267, 4
        %v269 = vadd.f32 %v267, %v268
        %v270 = vrot.slane %v269, 2
        %v271 = vadd.f32 %v269, %v270
        %v272 = vrot.slane %v271, 1
        %v273 = vadd.f32 %v271, %v272
        %v274 = vsel %vm238, %v264, 0.0
        %v275 = vrot.slane %v274, 4
        %v276 = vadd.f32 %v274, %v275
        %v277 = vrot.slane %v276, 2
        %v278 = vadd.f32 %v276, %v277
        %v279 = vrot.slane %v278, 1
        %v280 = vadd.f32 %v278, %v279
        %v281 = vlog2.pop %v273
        %v282 = vmul.f32 %v281, 0.6931472
        %v283 = vlog2.pop %v280
        %v284 = vmul.f32 %v283, 0.6931472
        %v285 = vlaneseq
        %v286 = vshrl.u32 %v285, 7
        %v287 = vperm.slane %v231, 0
        %v288 = vperm.slane %v231, 1
        %vm289 = vcmp.eq.s32.totalorder %v286, %v287
        %vm290 = vcmp.eq.s32.totalorder %v286, %v288
        %v291 = vsel %vm289, 1, 0
        %v292 = vsel %vm290, 1, 0
        %v293 = vcvt.s32.f32 %v291
        %v294 = vcvt.s32.f32 %v292
        %v297 = vrot.slane %v294, 4
        %v298 = vsel %vm238, %v293, %v297
        %v300 = vmul.f32 %v258, %v298
        %302 = vst [vmem:[#allocation1] ss:$2 sm:$0xff] %v300
        %v303 = vld.sshfl [vmem:[#allocation1] sm:$0xff pattern:$0x75316420]
        %v304 = vld.sshfl [vmem:[#allocation1 + $0x8] sm:$0xff pattern:$0x75316420]
        %v307 = vsel %vm238, %v303, 0.0
        %v308 = vrot.slane %v307, 4
        %v309 = vadd.f32 %v307, %v308
        %v310 = vrot.slane %v309, 2
        %v311 = vadd.f32 %v309, %v310
        %v312 = vrot.slane %v311, 1
        %v313 = vadd.f32 %v311, %v312
        %v314 = vsel %vm238, %v304, 0.0
        %v315 = vrot.slane %v314, 4
        %v316 = vadd.f32 %v314, %v315
        %v317 = vrot.slane %v316, 2
        %v318 = vadd.f32 %v316, %v317
        %v319 = vrot.slane %v318, 1
        %v320 = vadd.f32 %v318, %v319
        %v321 = vsub.f32 %v313, %v282
        %v322 = vsub.f32 %v320, %v284
        %v323 = vmul.f32 %v321, 1.442695
        %v324 = vpow.pop %v323
        %v325 = vmul.f32 %v322, 1.442695
        %v326 = vpow.pop %v325
        %vm327 = vcmp.eq.s32.totalorder %v231, 1
        %v328 = vsel %vm327, 0.2, 0.1
        %vm329 = vcmp.eq.s32.totalorder %v231, 2
        %v330 = vsel %vm329, 0.3, %v328
        %vm331 = vcmp.eq.s32.totalorder %v231, 3
        %v332 = vsel %vm331, 0.4, %v330
        %v334 = vperm.slane %v332, 0
        %v335 = vperm.slane %v332, 1
        %v338 = vmul.f32 %v321, %v334
        %v339 = vmul.f32 %v322, %v335
        %v340 = vsub.f32 1.0, %v324
        %v341 = vsub.f32 1.0, %v326
        %v342 = vmul.f32 %v340, %v340
        %v343 = vmul.f32 %v341, %v341
        %v344 = vsub.f32 0.0, %v342
        %v345 = vsub.f32 0.0, %v343
        %v346 = vmul.f32 %v344, %v338
        %v347 = vmul.f32 %v345, %v339
        %s348 = smul.u32 %s24, 256
        %v349 = vlaneseq
        %v350 = vand.u32 %v349, 127
        %v351 = vadd.s32 %v350, 128
        %v352 = vstv %s348
        %v353 = vadd.s32 %v352, %v350
        %v354 = vadd.s32 %v352, %v351
        %vm355 = vcmp.lt.s32.totalorder %v353, 256
        %vm356 = vcmp.lt.s32.totalorder %v354, 256
        %v357 = vsel %vm355, %v346, 0.0
        %v358 = vsel %vm356, %v347, 0.0
        %v359 = vld [vmem:[#allocation2] sm:$0x3]
        %v362 = vrot.slane %v358, 7
        %vm363 = vcmask 1040384
        %v364 = vsel %vm363, %v357, %v362
        %v366 = vadd.f32 %v359, %v364
        %v367 = vlaneseq
        %vm368 = vcmp.ge.s32.totalorder %v367, 0
        %vm369 = vcmp.lt.s32.totalorder %v367, 256
        %vm370 = vmand %vm368, %vm369
        %371 = vst.msk [vmem:[#allocation2] sm:$0x3] %vm370, %v366
        // Predicated region
        $region41: #{tpu_custom_call.1} parent=27 // pred_check
          %p372 = pneg %p221
        $region42: #{tpu_custom_call.1} parent=27 // pred_check_branch
          %374 = sbr.rel (%p372) target = $region44
        $region43: #{tpu_custom_call.1} parent=27 // pred_region
          %v375 = vld [vmem:[#allocation2] sm:$0x3]
          %v377 = vperm.slane %v375, 0
          %v378 = vperm.slane %v375, 1
          %v381 = vsel %vm363, %v377, 0.0
          %v382 = vsel %vm363, %v378, 0.0
          %v383 = vadd.f32 %v381, %v382
          %384 = vadd.xlane.f32.xlu0 %v383
          %v385 = vpop.xlane.xlu0 %384
          %v386 = vrot.slane %v385, 4
          %v387 = vadd.f32 %v385, %v386
          %v388 = vrot.slane %v387, 2
          %v389 = vadd.f32 %v387, %v388
          %v390 = vrot.slane %v389, 1
          %v391 = vadd.f32 %v389, %v390
          %s392 = vtos %v391
          %v393 = vstv %s392
          %vm394 = vcmask 0
          %395 = vst.msk [vmem:[%s220] sm:$0x1] %vm394, %v393
        $region44: #{tpu_custom_call.1} parent=27 // pred_fallthru
          _
        %p396 = scmp.lt.s32.totalorder %s23, 1
        %s397 = scalar_select %p396, %s23, 1
        %s398 = scalar_lea.vmem %s2, %s397
        // Predicated region
        $region45: #{tpu_custom_call.1} parent=27 // pred_check
          %p399 = pneg %p105
        $region46: #{tpu_custom_call.1} parent=27 // pred_check_branch
          %401 = sbr.rel (%p399) target = $region48
        $region47: #{tpu_custom_call.1} parent=27 // pred_region
          _
        $region48: #{tpu_custom_call.1} parent=27 // pred_fallthru
          _
      $region28: #{tpu_custom_call.1} parent=5 // pred_fallthru
        _
      %p402 = scmp.le.s32.totalorder 2, %s14
      // Predicated region
      $region49: #{tpu_custom_call.1} parent=5 // pred_check
        %p403 = pneg %p402
      $region50: #{tpu_custom_call.1} parent=5 // pred_check_branch
        %405 = sbr.rel (%p403) target = $region52
      $region51: #{tpu_custom_call.1} parent=5 // pred_region
        %s406 = ssub.s32 %s14, 2
        // Predicated region
        $region53: #{tpu_custom_call.1} parent=51 // pred_check
          %p407 = pneg %p111
        $region54: #{tpu_custom_call.1} parent=51 // pred_check_branch
          %409 = sbr.rel (%p407) target = $region56
        $region55: #{tpu_custom_call.1} parent=51 // pred_region
          %p410 = scmp.lt.s32.totalorder %s25, 1
          %s411 = scalar_select %p410, %s25, 1
          %s412 = scalar_lea.vmem %s2, %s411
        $region56: #{tpu_custom_call.1} parent=51 // pred_fallthru
          _
      $region52: #{tpu_custom_call.1} parent=5 // pred_fallthru
        _
    $region6: #{tpu_custom_call.1} parent=1 // loop_footer
      %s18 = sadd.s32 1, %s14
    $region7: #{tpu_custom_call.1} parent=1 // loop_footer_branch
      %13 = sbr.rel target = $region3
    $region8: #{tpu_custom_call.1} parent=1 // loop_exit
      _
    %413 = vsyncpa [#allocation4], 1
    %s414 = scalar_lea.sflag [#allocation4], 1
    %415 = vsyncpa %s414, 1
    %416 = vsyncpa [#allocation6], 1
    %s417 = scalar_lea.sflag [#allocation6], 1
    %418 = vsyncpa %s417, 1

</llo_original>
